<compile_context>
chip_gen: v7x
topology: tpu7x:2x2x1
jax: 0.10.0
libtpu: 0.0.40
codegen_flags: <defaults>
</compile_context>

<pallas_src>
import jax
import jax.numpy as jnp
from jax.experimental import pallas as pl
from jax.experimental.pallas import tpu as pltpu


def _round_up(x, m):
    return (x + m - 1) // m * m


def _cdiv(a, b):
    return -(-a // b)


# ----------------------------------------------------------------------------
# Pallas kernel: fused complex matmul (all FLOPs live here)
# ----------------------------------------------------------------------------

def _fused_matmul_kernel(x_ref, w_ref, o_ref):
    # x_ref: (TM, 2*Cin)   w_ref: (2*Cin, N)   o_ref: (TM, N)
    o_ref[...] = jnp.dot(
        x_ref[...], w_ref[...], preferred_element_type=jnp.float32
    ).astype(o_ref.dtype)


def _pick_tm(m, k, n, itemsize, budget=24 * 1024 * 1024):
    """Pick the M tile: large (amortize per-step overhead), VMEM-safe, >=2 steps."""
    tm = 512
    # (x tile + out tile) double-buffered + weight (x2 conservatively).
    while tm > 8 and 2 * tm * (k + n) * itemsize + 2 * k * n * itemsize > budget:
        tm //= 2
    # Keep >= 2 grid steps so the "parallel" axis can be sharded across the two
    # TensorCores on v7x (a grid of 1 leaves one core idle).
    while tm > 8 and _cdiv(m, tm) < 2:
        tm //= 2
    tm = max(tm, 8)
    return tm, _round_up(m, tm)


def _fused_matmul(x, w, tm):
    """x: (M_pad, K), w: (K, N) -> (M_pad, N) f32. Grid tiles M only; weight resident."""
    m, k = x.shape
    _, n = w.shape
    return pl.pallas_call(
        _fused_matmul_kernel,
        out_shape=jax.ShapeDtypeStruct((m, n), jnp.float32),
        grid_spec=pltpu.PrefetchScalarGridSpec(
            num_scalar_prefetch=0,
            grid=(m // tm,),
            in_specs=[
                pl.BlockSpec((tm, k), lambda i: (i, 0)),  # activation tile
                pl.BlockSpec((k, n), lambda i: (0, 0)),   # fused weights (resident)
            ],
            out_specs=pl.BlockSpec((tm, n), lambda i: (i, 0)),
        ),
        compiler_params=pltpu.CompilerParams(
            dimension_semantics=("parallel",),
            vmem_limit_bytes=32 * 1024 * 1024,   # safe on v5e/v6e/v7x
        ),
    )(x, w)


# ----------------------------------------------------------------------------
# Phase-decomposed col2im (dense shifted adds + one pixel-shuffle interleave)
# ----------------------------------------------------------------------------

def _col2im_phases(cols, stride, output_padding):
    """cols: (B, H, W, kH, kW, C) channels-last per-tap GEMM output.

    Returns the un-cropped full output (B, Hb*sh, Wb*sw, C) where
    Hb*sh >= (H-1)*sh + kH + oph; positions past the true extent are zero.
    """
    B, H, W, kH, kW, C = cols.shape
    sh, sw = stride
    oph, opw = output_padding
    h_full = (H - 1) * sh + kH
    w_full = (W - 1) * sw + kW
    Hb = _cdiv(h_full + oph, sh)
    Wb = _cdiv(w_full + opw, sw)

    phase_accs = []
    for p_h in range(sh):
        for p_w in range(sw):
            acc = jnp.zeros((B, Hb, Wb, C), cols.dtype)
            for kh in range(p_h, kH, sh):
                dh = kh // sh
                for kw in range(p_w, kW, sw):
                    dw = kw // sw
                    # dense (contiguous) update — no strided scatter
                    acc = acc.at[:, dh:dh + H, dw:dw + W, :].add(
                        cols[:, :, :, kh, kw, :])
            phase_accs.append(acc)

    if sh == 1 and sw == 1:
        return phase_accs[0]

    phases = jnp.stack(phase_accs, axis=0).reshape(sh, sw, B, Hb, Wb, C)
    out = jnp.transpose(phases, (2, 3, 0, 4, 1, 5))      # (B, Hb, sh, Wb, sw, C)
    return out.reshape(B, Hb * sh, Wb * sw, C)


# ----------------------------------------------------------------------------
# Forward wrapper
# ----------------------------------------------------------------------------

def complex_conv_transpose2d(x, w_fused, bias_fused, *, cout, kernel_size,
                             stride, padding, output_padding,
                             compute_dtype=None):
    """x: [B, 2*Cin, H, W] -> [B, 2*Cout, Hout, Wout] (complex_dim=1, groups=1)."""
    B, C2, H, W = x.shape
    Cin = C2 // 2
    kH, kW = kernel_size
    sh, sw = stride
    ph, pw = padding
    oph, opw = output_padding
    CC = 2 * cout

    # split complex channels, channels-last, flatten pixels: (B*H*W, 2*Cin)
    xr = jnp.transpose(x[:, :Cin], (0, 2, 3, 1))
    xi = jnp.transpose(x[:, Cin:], (0, 2, 3, 1))
    xcat = jnp.concatenate([xr, xi], axis=-1).reshape(B * H * W, 2 * Cin)

    if compute_dtype is not None:            # optional bf16 GEMM (f32 accumulate)
        xcat = xcat.astype(compute_dtype)
        w_fused = w_fused.astype(compute_dtype)

    m = B * H * W
    k = 2 * Cin
    n = kH * kW * CC                          # TRUE column count — no 128 padding
    tm, m_pad = _pick_tm(m, k, n, jnp.dtype(xcat.dtype).itemsize)
    if m_pad != m:
        xcat = jnp.pad(xcat, ((0, m_pad - m), (0, 0)))

    cols = _fused_matmul(xcat, w_fused, tm)               # (m_pad, n) f32
    cols = cols[:m].reshape(B, H, W, kH, kW, CC)          # already channels-last

    out = _col2im_phases(cols, (sh, sw), (oph, opw))      # (B, >=h_full, >=w_full, CC)

    h_out = (H - 1) * sh - 2 * ph + kH + oph
    w_out = (W - 1) * sw - 2 * pw + kW + opw
    out = out[:, ph:ph + h_out, pw:pw + w_out, :]          # crop padding / keep out_pad
    out = out + bias_fused[None, None, None, :].astype(out.dtype)  # bias once, NHWC
    out = jnp.transpose(out, (0, 3, 1, 2))                 # single NHWC->NCHW relayout
    return out.astype(x.dtype)


class ComplexConvTranspose2dPallas:
    """JAX/Pallas port of ComplexConvTranspose2d (groups=1, complex_dim=1)."""

    def __init__(self, in_channels, out_channels, kernel_size=(1, 1),
                 stride=(1, 1), padding=(0, 0), output_padding=(0, 0),
                 groups=1, causal=False, complex_dim=1, *, key,
                 compute_dtype=None):
        # TODO(synk): groups > 1 and the complex_dim == 0 branch are not implemented.
        assert groups == 1 and complex_dim == 1
        self.in_channels = in_channels // 2
        self.out_channels = out_channels // 2
        self.kernel_size = tuple(kernel_size)
        self.stride = tuple(stride)
        self.padding = tuple(padding)
        self.output_padding = tuple(output_padding)
        self.causal = causal  # stored but unused in forward (matches reference)
        self.compute_dtype = compute_dtype

        kH, kW = self.kernel_size
        fan_in = max(self.out_channels * kH * kW, 1)
        bound = 1.0 / jnp.sqrt(jnp.float32(fan_in))
        ks = jax.random.split(key, 4)

        def u(k, shape):
            return jax.random.uniform(k, shape, jnp.float32, -bound, bound)

        self.w_r = u(ks[0], (self.in_channels, self.out_channels, kH, kW))
        self.b_r = u(ks[1], (self.out_channels,))
        self.w_i = u(ks[2], (self.in_channels, self.out_channels, kH, kW))
        self.b_i = u(ks[3], (self.out_channels,))

        # Precompute the fused weight/bias ONCE (static across calls).
        # Column order (kh, kw, complex, Cout) so GEMM output is per-tap
        # channels-last and no 7-D transpose is needed afterwards.
        wr_t = jnp.transpose(self.w_r, (0, 2, 3, 1))       # (Cin,kH,kW,Cout)
        wi_t = jnp.transpose(self.w_i, (0, 2, 3, 1))
        top = jnp.stack([wr_t, wi_t], axis=3)              # rows = real input
        bot = jnp.stack([-wi_t, wr_t], axis=3)             # rows = imag input
        n_cols = kH * kW * 2 * self.out_channels
        self.w_fused = jnp.concatenate(
            [top.reshape(self.in_channels, n_cols),
             bot.reshape(self.in_channels, n_cols)], axis=0)  # (2*Cin, n_cols)
        self.bias_fused = jnp.concatenate(
            [self.b_r - self.b_i, self.b_r + self.b_i])        # (2*Cout,)

    def __call__(self, inputs):
        return complex_conv_transpose2d(
            inputs, self.w_fused, self.bias_fused,
            cout=self.out_channels, kernel_size=self.kernel_size,
            stride=self.stride, padding=self.padding,
            output_padding=self.output_padding,
            compute_dtype=self.compute_dtype)


# ----------------------------------------------------------------------------
# Pure-JAX reference (for correctness check)
# ----------------------------------------------------------------------------

def _conv_transpose2d_ref(x, w, b, stride, padding, output_padding):
    _, _, kH, kW = w.shape
    sh, sw = stride
    ph, pw = padding
    oph, opw = output_padding
    w_t = jnp.transpose(jnp.flip(w, axis=(2, 3)), (1, 0, 2, 3))  # (Cout,Cin,kH,kW)
    out = jax.lax.conv_general_dilated(
        x, w_t, window_strides=(1, 1),
        padding=[(kH - 1 - ph, kH - 1 - ph + oph),
                 (kW - 1 - pw, kW - 1 - pw + opw)],
        lhs_dilation=(sh, sw), rhs_dilation=(1, 1),
        dimension_numbers=('NCHW', 'OIHW', 'NCHW'))
    return out + b[None, :, None, None]


def _ref_forward(model, x):
    Cin = model.in_channels
    real, imag = x[:, :Cin], x[:, Cin:]
    args = (model.stride, model.padding, model.output_padding)
    rr = _conv_transpose2d_ref(real, model.w_r, model.b_r, *args)
    ir = _conv_transpose2d_ref(imag, model.w_r, model.b_r, *args)
    ri = _conv_transpose2d_ref(real, model.w_i, model.b_i, *args)
    ii = _conv_transpose2d_ref(imag, model.w_i, model.b_i, *args)
    return jnp.concatenate([rr - ii, ir + ri], axis=1)


# ----------------------------------------------------------------------------
# Main
# ----------------------------------------------------------------------------

if __name__ == "__main__":
    key = jax.random.PRNGKey(0)
    k1, k2, kx1, kx2 = jax.random.split(key, 4)

    # Config 1: module defaults (1x1 kernel, stride 1).  x: [2, 4, 16, 16]
    m1 = ComplexConvTranspose2dPallas(4, 4, key=k1)
    x1 = jax.random.normal(kx1, (2, 4, 16, 16), jnp.float32)
    y1 = m1(x1)
    jax.block_until_ready(y1)
    r1 = _ref_forward(m1, x1)
    assert y1.shape == r1.shape, (y1.shape, r1.shape)
    assert jnp.allclose(y1, r1, atol=1e-4, rtol=1e-4), float(jnp.max(jnp.abs(y1 - r1)))

    # Config 2: DCCRN-decoder-like strided transposed conv.  x: [2, 8, 16, 8]
    m2 = ComplexConvTranspose2dPallas(
        8, 4, kernel_size=(5, 2), stride=(2, 1), padding=(2, 0),
        output_padding=(1, 0), key=k2)
    x2 = jax.random.normal(kx2, (2, 8, 16, 8), jnp.float32)
    y2 = m2(x2)
    jax.block_until_ready(y2)
    r2 = _ref_forward(m2, x2)
    assert y2.shape == r2.shape, (y2.shape, r2.shape)
    assert jnp.allclose(y2, r2, atol=1e-4, rtol=1e-4), float(jnp.max(jnp.abs(y2 - r2)))

    print("KERNEL_OK")
</pallas_src>

<mosaic_0001>
module attributes {stable_mosaic.version = 11 : i64} {
  func.func @_fused_matmul_kernel(%arg0: i32, %arg1: memref<256x4xf32, #tpu.memory_space<vmem>>, %arg2: memref<4x4xf32, #tpu.memory_space<vmem>>, %arg3: memref<256x4xf32, #tpu.memory_space<vmem>>) attributes {dimension_semantics = [#tpu.dimension_semantics<parallel>], iteration_bounds = array<i64: 2>, scalar_prefetch = 0 : i64, scratch_operands = 0 : i64, tpu.core_type = #tpu.core_type<tc>, window_params = [{transform_indices = @transform_0, window_bounds = array<i64: 256, 4>}, {pipeline_mode = #tpu.pipeline_mode<synchronous>, transform_indices = @transform_1, window_bounds = array<i64: 4, 4>}, {transform_indices = @transform_2, window_bounds = array<i64: 256, 4>}]} {
    %c0 = arith.constant 0 : index
    %c0_0 = arith.constant 0 : index
    %0 = vector.load %arg1[%c0, %c0_0] : memref<256x4xf32, #tpu.memory_space<vmem>>, vector<256x4xf32>
    %c0_1 = arith.constant 0 : index
    %c0_2 = arith.constant 0 : index
    %1 = vector.load %arg2[%c0_1, %c0_2] : memref<4x4xf32, #tpu.memory_space<vmem>>, vector<4x4xf32>
    %cst = arith.constant dense<0.000000e+00> : vector<256x4xf32>
    %2 = tpu.matmul %0, %1, %cst {dimension_numbers = #tpu.dot_dimension_numbers<[1], [0], [0], [1], [0, 0, 1, 1], [], []>} : vector<256x4xf32>, vector<4x4xf32>, vector<256x4xf32> -> vector<256x4xf32>
    %c0_3 = arith.constant 0 : index
    %c0_4 = arith.constant 0 : index
    %3 = vector.load %arg3[%c0_3, %c0_4] : memref<256x4xf32, #tpu.memory_space<vmem>>, vector<256x4xf32>
    tpu.vector_store %arg3[%c0_3, %c0_4], %2 {strides = array<i32>} : memref<256x4xf32, #tpu.memory_space<vmem>>, vector<256x4xf32>,
    return
  }
  func.func @transform_0(%arg0: i32) -> (i32, i32) {
    %c0_i32 = arith.constant 0 : i32
    %c0_i32_0 = arith.constant 0 : i32
    return %arg0, %c0_i32 : i32, i32
  }
  func.func @transform_1(%arg0: i32) -> (i32, i32) {
    %c0_i32 = arith.constant 0 : i32
    %c0_i32_0 = arith.constant 0 : i32
    %c0_i32_1 = arith.constant 0 : i32
    return %c0_i32, %c0_i32_0 : i32, i32
  }
  func.func @transform_2(%arg0: i32) -> (i32, i32) {
    %c0_i32 = arith.constant 0 : i32
    %c0_i32_0 = arith.constant 0 : i32
    return %arg0, %c0_i32 : i32, i32
  }
}

</mosaic_0001>

<llo_original>
// kernel: tpu_custom_call.1
$region0: #{tpu_custom_call.1}
  #allocation0 [shape = 'u32[]', space=smem, size = 0x4, offset = 0x4, fixed_abs, tag = 'smem constant byte address 0x4 - core index']
  #allocation1 [shape = 'u32[144,128]{1,0:T(1,128)}', space=vmem, size = 0x12000, scoped, tag = 'internal scratch']
  %s0 = inlined_call_operand.vmem [shape: f32[512,4], index: 0, kind: input, shape index: {}]
  %s1 = inlined_call_operand.vmem [shape: f32[4,4], index: 1, kind: input, shape index: {}]
  %s2 = inlined_call_operand.vmem [shape: f32[512,4], index: 2, kind: output, shape index: {}]
  %s3 = sld [smem:[#allocation0]]
  $region41: #{tpu_custom_call.1} parent=0
    _
  %s5 = ssub.s32 1, %s3
  %s6 = scalar_select 0, %s5, %s3
  loop: start=0, step=1, limit=4
  $region2: #{tpu_custom_call.1} parent=0 // loop_pre_header
    _
  $region3: #{tpu_custom_call.1} parent=0 // loop_header
    %s8 = sphi 0, %s12
    %p9 = scmp.ge.s32.totalorder %s8, 4
    %s18 = sphi 0, %s20
    %s21 = sphi 0, %s18
    %s22 = sphi 0, %s21
    %s38 = sphi 0, %s22
    %s42 = sphi 0, %s42
    %s44 = sphi 0, %s42
    %s45 = sphi 0, %s44
    %s59 = sphi 0, %s45
    %s65 = sphi 0, %s67
    %s68 = sphi 0, %s65
    %s69 = sphi 0, %s68
    %s85 = sphi 0, %s69
  $region4: #{tpu_custom_call.1} parent=0 // loop_header_branch
    %11 = sbr.rel (%p9) target = $region8
  $region5: #{tpu_custom_call.1} parent=0 // loop_body
    %s13 = ssub.s32 %s8, 1
    %s14 = ssub.s32 %s8, 2
    %s15 = sadd.s32 %s8, 1
    %s16 = ssub.s32 %s8, %s15
    %p17 = scmp.eq.s32.totalorder %s16, 0
    %s19 = sadd.s32 %s18, 1
    %s20 = scalar_select %p17, %s18, %s19
    %p23 = pneg %p17
    %p24 = scmp.eq.s32.totalorder %s8, 1
    %p25 = por %p23, %p24
    %p26 = scmp.ne.s32.totalorder %s18, %s21
    %p27 = scmp.eq.s32.totalorder %s8, 0
    %p28 = por %p26, %p27
    %p29 = scmp.ne.s32.totalorder %s18, %s21
    %p30 = scmp.eq.s32.totalorder %s13, 1
    %p31 = por %p29, %p30
    %p32 = scmp.ne.s32.totalorder %s21, %s22
    %p33 = scmp.eq.s32.totalorder %s13, 0
    %p34 = por %p32, %p33
    %p35 = scmp.ne.s32.totalorder %s21, %s22
    %p36 = scmp.eq.s32.totalorder %s14, 1
    %p37 = por %p35, %p36
    %p39 = scmp.ne.s32.totalorder %s22, %s38
    %p40 = scmp.eq.s32.totalorder %s14, 0
    %p41 = por %p39, %p40
    %s43 = sadd.s32 %s42, 1
    %p46 = scmp.eq.s32.totalorder %s8, 1
    %p47 = scmp.ne.s32.totalorder %s42, %s44
    %p48 = scmp.eq.s32.totalorder %s8, 0
    %p49 = por %p47, %p48
    %p50 = scmp.ne.s32.totalorder %s42, %s44
    %p51 = scmp.eq.s32.totalorder %s13, 1
    %p52 = por %p50, %p51
    %p53 = scmp.ne.s32.totalorder %s44, %s45
    %p54 = scmp.eq.s32.totalorder %s13, 0
    %p55 = por %p53, %p54
    %p56 = scmp.ne.s32.totalorder %s44, %s45
    %p57 = scmp.eq.s32.totalorder %s14, 1
    %p58 = por %p56, %p57
    %p60 = scmp.ne.s32.totalorder %s45, %s59
    %p61 = scmp.eq.s32.totalorder %s14, 0
    %p62 = por %p60, %p61
    %s63 = ssub.s32 %s8, %s15
    %p64 = scmp.eq.s32.totalorder %s63, 0
    %s66 = sadd.s32 %s65, 1
    %s67 = scalar_select %p64, %s65, %s66
    %p70 = pneg %p64
    %p71 = scmp.eq.s32.totalorder %s8, 1
    %p72 = por %p70, %p71
    %p73 = scmp.ne.s32.totalorder %s65, %s68
    %p74 = scmp.eq.s32.totalorder %s8, 0
    %p75 = por %p73, %p74
    %p76 = scmp.ne.s32.totalorder %s65, %s68
    %p77 = scmp.eq.s32.totalorder %s13, 1
    %p78 = por %p76, %p77
    %p79 = scmp.ne.s32.totalorder %s68, %s69
    %p80 = scmp.eq.s32.totalorder %s13, 0
    %p81 = por %p79, %p80
    %p82 = scmp.ne.s32.totalorder %s68, %s69
    %p83 = scmp.eq.s32.totalorder %s14, 1
    %p84 = por %p82, %p83
    %p86 = scmp.ne.s32.totalorder %s69, %s85
    %p87 = scmp.eq.s32.totalorder %s14, 0
    %p88 = por %p86, %p87
    %p89 = scmp.le.s32.totalorder 1, %s8
    %p90 = scmp.lt.s32.totalorder %s8, 3
    %p91 = pnand %p89, %p90
    %p92 = pneg %p91
    // Predicated region
    $region9: #{tpu_custom_call.1} parent=5 // pred_check
      _
    $region10: #{tpu_custom_call.1} parent=5 // pred_check_branch
      %94 = sbr.rel (%p91) target = $region12
    $region11: #{tpu_custom_call.1} parent=5 // pred_region
      %s95 = ssub.s32 %s8, 1
      // Predicated region
      $region13: #{tpu_custom_call.1} parent=11 // pred_check
        %p96 = pneg %p55
      $region14: #{tpu_custom_call.1} parent=11 // pred_check_branch
        %98 = sbr.rel (%p96) target = $region16
      $region15: #{tpu_custom_call.1} parent=11 // pred_region
        _
      $region16: #{tpu_custom_call.1} parent=11 // pred_fallthru
        _
    $region12: #{tpu_custom_call.1} parent=5 // pred_fallthru
      _
    %p99 = scmp.lt.s32.totalorder %s8, 2
    // Predicated region
    $region17: #{tpu_custom_call.1} parent=5 // pred_check
      %p100 = pneg %p99
    $region18: #{tpu_custom_call.1} parent=5 // pred_check_branch
      %102 = sbr.rel (%p100) target = $region20
    $region19: #{tpu_custom_call.1} parent=5 // pred_region
      // Predicated region
      $region21: #{tpu_custom_call.1} parent=19 // pred_check
        %p103 = pneg %p28
      $region22: #{tpu_custom_call.1} parent=19 // pred_check_branch
        %105 = sbr.rel (%p103) target = $region24
      $region23: #{tpu_custom_call.1} parent=19 // pred_region
        %s106 = smul.u32 32, %s8
        %p107 = scmp.lt.s32.totalorder %s106, 63
        %s108 = scalar_select %p107, %s106, 63
        %s109 = smul.addr %s108, 8
        %s110 = scalar_lea.vmem %s0, %s109
        %s111 = smul.u32 32, %s8
      $region24: #{tpu_custom_call.1} parent=19 // pred_fallthru
        _
    $region20: #{tpu_custom_call.1} parent=5 // pred_fallthru
      _
    %p112 = scmp.le.s32.totalorder 1, %s8
    %p113 = scmp.lt.s32.totalorder %s8, 3
    %p114 = pnand %p112, %p113
    %p115 = pneg %p114
    // Predicated region
    $region25: #{tpu_custom_call.1} parent=5 // pred_check
      _
    $region26: #{tpu_custom_call.1} parent=5 // pred_check_branch
      %117 = sbr.rel (%p114) target = $region28
    $region27: #{tpu_custom_call.1} parent=5 // pred_region
      %s118 = ssub.s32 %s8, 1
      %s119 = smul.u32 32, %s13
      %p120 = scmp.lt.s32.totalorder %s119, 63
      %s121 = scalar_select %p120, %s119, 63
      %s122 = smul.addr %s121, 8
      %s123 = scalar_lea.vmem %s0, %s122
      %p124 = pneg %p34
      %p125 = pneg %p31
      %p126 = pneg %p55
      %p127 = pneg %p52
      %p128 = pneg %p81
      %p129 = pneg %p78
      %s130 = smul.u32 32, %s13
      %p131 = scmp.lt.s32.totalorder %s130, 63
      %s132 = scalar_select %p131, %s130, 63
      %s133 = smul.addr %s132, 8
      %s134 = scalar_lea.vmem %s2, %s133
      %s135 = smul.u32 32, %s13
      %p136 = scmp.lt.s32.totalorder %s135, 63
      %s137 = scalar_select %p136, %s135, 63
      %s138 = smul.addr %s137, 8
      %s139 = scalar_lea.vmem %s0, %s138
      %s140 = smul.u32 32, %s13
      %s141 = smul.u32 32, %s13
      %p142 = scmp.lt.s32.totalorder %s141, 63
      %s143 = scalar_select %p142, %s141, 63
      %s144 = smul.addr %s143, 8
      %s145 = scalar_lea.vmem %s2, %s144
      %s146 = smul.u32 32, %s13
      %v147 = vld [vmem:[%s139] sm:$0xff]
      %v148 = vld [vmem:[%s139 + $0x8] sm:$0xff]
      %v149 = vld [vmem:[%s139 + $0x10] sm:$0xff]
      %v150 = vld [vmem:[%s139 + $0x18] sm:$0xff]
      %v151 = vld [vmem:[%s139 + $0x20] sm:$0xff]
      %v152 = vld [vmem:[%s139 + $0x28] sm:$0xff]
      %v153 = vld [vmem:[%s139 + $0x30] sm:$0xff]
      %v154 = vld [vmem:[%s139 + $0x38] sm:$0xff]
      %v155 = vld [vmem:[%s139 + $0x40] sm:$0xff]
      %v156 = vld [vmem:[%s139 + $0x48] sm:$0xff]
      %v157 = vld [vmem:[%s139 + $0x50] sm:$0xff]
      %v158 = vld [vmem:[%s139 + $0x58] sm:$0xff]
      %v159 = vld [vmem:[%s139 + $0x60] sm:$0xff]
      %v160 = vld [vmem:[%s139 + $0x68] sm:$0xff]
      %v161 = vld [vmem:[%s139 + $0x70] sm:$0xff]
      %v162 = vld [vmem:[%s139 + $0x78] sm:$0xff]
      %v163 = vld [vmem:[%s139 + $0x80] sm:$0xff]
      %v164 = vld [vmem:[%s139 + $0x88] sm:$0xff]
      %v165 = vld [vmem:[%s139 + $0x90] sm:$0xff]
      %v166 = vld [vmem:[%s139 + $0x98] sm:$0xff]
      %v167 = vld [vmem:[%s139 + $0xa0] sm:$0xff]
      %v168 = vld [vmem:[%s139 + $0xa8] sm:$0xff]
      %v169 = vld [vmem:[%s139 + $0xb0] sm:$0xff]
      %v170 = vld [vmem:[%s139 + $0xb8] sm:$0xff]
      %v171 = vld [vmem:[%s139 + $0xc0] sm:$0xff]
      %v172 = vld [vmem:[%s139 + $0xc8] sm:$0xff]
      %v173 = vld [vmem:[%s139 + $0xd0] sm:$0xff]
      %v174 = vld [vmem:[%s139 + $0xd8] sm:$0xff]
      %v175 = vld [vmem:[%s139 + $0xe0] sm:$0xff]
      %v176 = vld [vmem:[%s139 + $0xe8] sm:$0xff]
      %v177 = vld [vmem:[%s139 + $0xf0] sm:$0xff]
      %v178 = vld [vmem:[%s139 + $0xf8] sm:$0xff]
      %v179 = vld [vmem:[%s1] sm:$0xf]
      %vm180 = vcmask 31744
      %v182 = vsel %vm180, %v147, 0
      %v185 = vsel %vm180, %v148, 0
      %v188 = vsel %vm180, %v149, 0
      %v191 = vsel %vm180, %v150, 0
      %v194 = vsel %vm180, %v151, 0
      %v197 = vsel %vm180, %v152, 0
      %v200 = vsel %vm180, %v153, 0
      %v203 = vsel %vm180, %v154, 0
      %v206 = vsel %vm180, %v155, 0
      %v209 = vsel %vm180, %v156, 0
      %v212 = vsel %vm180, %v157, 0
      %v215 = vsel %vm180, %v158, 0
      %v218 = vsel %vm180, %v159, 0
      %v221 = vsel %vm180, %v160, 0
      %v224 = vsel %vm180, %v161, 0
      %v227 = vsel %vm180, %v162, 0
      %v230 = vsel %vm180, %v163, 0
      %v233 = vsel %vm180, %v164, 0
      %v236 = vsel %vm180, %v165, 0
      %v239 = vsel %vm180, %v166, 0
      %v242 = vsel %vm180, %v167, 0
      %v245 = vsel %vm180, %v168, 0
      %v248 = vsel %vm180, %v169, 0
      %v251 = vsel %vm180, %v170, 0
      %v254 = vsel %vm180, %v171, 0
      %v257 = vsel %vm180, %v172, 0
      %v260 = vsel %vm180, %v173, 0
      %v263 = vsel %vm180, %v174, 0
      %v266 = vsel %vm180, %v175, 0
      %v269 = vsel %vm180, %v176, 0
      %v272 = vsel %vm180, %v177, 0
      %v275 = vsel %vm180, %v178, 0
      %vm277 = vcmask 1043456
      %v279 = vsel %vm277, %v179, 0
      %281 = vmatprep.subr.mxu0 0.0
      %282 = vmatpush1.msra.mxu0 %v279
      %283 = vmatprep.subr.mxu0 0.0
      %284 = vmatpush1.msra.mxu0 0.0
      %285 = vmatprep.subr.mxu0 0.0
      %286 = vmatpush1.msra.mxu0 0.0
      %287 = vmatprep.subr.mxu0 0.0
      %288 = vmatpush1.msra.mxu0 0.0
      %289 = vmatprep.subr.mxu0 0.0
      %290 = vmatpush1.msra.mxu0 0.0
      %291 = vmatprep.subr.mxu0 0.0
      %292 = vmatpush1.msra.mxu0 0.0
      %293 = vmatprep.subr.mxu0 0.0
      %294 = vmatpush1.msra.mxu0 0.0
      %295 = vmatprep.subr.mxu0 0.0
      %296 = vmatpush1.msra.mxu0 0.0
      %297 = vmatprep.subr.mxu0 0.0
      %298 = vmatpush1.msra.mxu0 0.0
      %299 = vmatprep.subr.mxu0 0.0
      %300 = vmatpush1.msra.mxu0 0.0
      %301 = vmatprep.subr.mxu0 0.0
      %302 = vmatpush1.msra.mxu0 0.0
      %303 = vmatprep.subr.mxu0 0.0
      %304 = vmatpush1.msra.mxu0 0.0
      %305 = vmatprep.subr.mxu0 0.0
      %306 = vmatpush1.msra.mxu0 0.0
      %307 = vmatprep.subr.mxu0 0.0
      %308 = vmatpush1.msra.mxu0 0.0
      %309 = vmatprep.subr.mxu0 0.0
      %310 = vmatpush1.msra.mxu0 0.0
      %311 = vmatprep.subr.mxu0 0.0
      %312 = vmatpush1.msra.mxu0 0.0
      %313 = vmatprep.subr.mxu0 0.0
      %314 = vmatpush1.msra.mxu0 0.0
      %315 = vmatprep.subr.mxu0 0.0
      %316 = vmatpush1.msra.mxu0 0.0
      %317 = vmatprep.subr.mxu0 0.0
      %318 = vmatpush1.msra.mxu0 0.0
      %319 = vmatprep.subr.mxu0 0.0
      %320 = vmatpush1.msra.mxu0 0.0
      %321 = vmatprep.subr.mxu0 0.0
      %322 = vmatpush1.msra.mxu0 0.0
      %323 = vmatprep.subr.mxu0 0.0
      %324 = vmatpush1.msra.mxu0 0.0
      %325 = vmatprep.subr.mxu0 0.0
      %326 = vmatpush1.msra.mxu0 0.0
      %327 = vmatprep.subr.mxu0 0.0
      %328 = vmatpush1.msra.mxu0 0.0
      %329 = vmatprep.subr.mxu0 0.0
      %330 = vmatpush1.msra.mxu0 0.0
      %331 = vmatprep.subr.mxu0 0.0
      %332 = vmatpush1.msra.mxu0 0.0
      %333 = vmatprep.subr.mxu0 0.0
      %334 = vmatpush1.msra.mxu0 0.0
      %335 = vmatprep.subr.mxu0 0.0
      %336 = vmatpush1.msra.mxu0 0.0
      %337 = vmatprep.subr.mxu0 0.0
      %338 = vmatpush1.msra.mxu0 0.0
      %339 = vmatprep.subr.mxu0 0.0
      %340 = vmatpush1.msra.mxu0 0.0
      %341 = vmatprep.subr.mxu0 0.0
      %342 = vmatpush1.msra.mxu0 0.0
      %343 = vmatprep.subr.mxu0 0.0
      %344 = vmatpush1.msra.mxu0 0.0
      %345 = vmatprep.mubr.f32.mxu0 0.0
      %346 = vmatmul.mubr.f32.gmra.mrb[0].mxu0 %v182
      %v347 = vpop.f32.mrb[0].mxu0
      %v348 = vadd.f32 0.0, %v347
      %v349 = vpop.f32.mrb[0].mxu0
      %350 = vmatprep.mubr.f32.mxu0 0.0
      %351 = vmatmul.mubr.f32.gmra.mrb[0].mxu0 %v185
      %v352 = vpop.f32.mrb[0].mxu0
      %v353 = vadd.f32 0.0, %v352
      %v354 = vpop.f32.mrb[0].mxu0
      %355 = vmatprep.mubr.f32.mxu0 0.0
      %356 = vmatmul.mubr.f32.gmra.mrb[0].mxu0 %v188
      %v357 = vpop.f32.mrb[0].mxu0
      %v358 = vadd.f32 0.0, %v357
      %v359 = vpop.f32.mrb[0].mxu0
      %360 = vmatprep.mubr.f32.mxu0 0.0
      %361 = vmatmul.mubr.f32.gmra.mrb[0].mxu0 %v191
      %v362 = vpop.f32.mrb[0].mxu0
      %v363 = vadd.f32 0.0, %v362
      %v364 = vpop.f32.mrb[0].mxu0
      %365 = vmatprep.mubr.f32.mxu0 0.0
      %366 = vmatmul.mubr.f32.gmra.mrb[0].mxu0 %v194
      %v367 = vpop.f32.mrb[0].mxu0
      %v368 = vadd.f32 0.0, %v367
      %v369 = vpop.f32.mrb[0].mxu0
      %370 = vmatprep.mubr.f32.mxu0 0.0
      %371 = vmatmul.mubr.f32.gmra.mrb[0].mxu0 %v197
      %v372 = vpop.f32.mrb[0].mxu0
      %v373 = vadd.f32 0.0, %v372
      %v374 = vpop.f32.mrb[0].mxu0
      %375 = vmatprep.mubr.f32.mxu0 0.0
      %376 = vmatmul.mubr.f32.gmra.mrb[0].mxu0 %v200
      %v377 = vpop.f32.mrb[0].mxu0
      %v378 = vadd.f32 0.0, %v377
      %v379 = vpop.f32.mrb[0].mxu0
      %380 = vmatprep.mubr.f32.mxu0 0.0
      %381 = vmatmul.mubr.f32.gmra.mrb[0].mxu0 %v203
      %v382 = vpop.f32.mrb[0].mxu0
      %v383 = vadd.f32 0.0, %v382
      %v384 = vpop.f32.mrb[0].mxu0
      %385 = vmatprep.mubr.f32.mxu0 0.0
      %386 = vmatmul.mubr.f32.gmra.mrb[0].mxu0 %v206
      %v387 = vpop.f32.mrb[0].mxu0
      %v388 = vadd.f32 0.0, %v387
      %v389 = vpop.f32.mrb[0].mxu0
      %390 = vmatprep.mubr.f32.mxu0 0.0
      %391 = vmatmul.mubr.f32.gmra.mrb[0].mxu0 %v209
      %v392 = vpop.f32.mrb[0].mxu0
      %v393 = vadd.f32 0.0, %v392
      %v394 = vpop.f32.mrb[0].mxu0
      %395 = vmatprep.mubr.f32.mxu0 0.0
      %396 = vmatmul.mubr.f32.gmra.mrb[0].mxu0 %v212
      %v397 = vpop.f32.mrb[0].mxu0
      %v398 = vadd.f32 0.0, %v397
      %v399 = vpop.f32.mrb[0].mxu0
      %400 = vmatprep.mubr.f32.mxu0 0.0
      %401 = vmatmul.mubr.f32.gmra.mrb[0].mxu0 %v215
      %v402 = vpop.f32.mrb[0].mxu0
      %v403 = vadd.f32 0.0, %v402
      %v404 = vpop.f32.mrb[0].mxu0
      %405 = vmatprep.mubr.f32.mxu0 0.0
      %406 = vmatmul.mubr.f32.gmra.mrb[0].mxu0 %v218
      %v407 = vpop.f32.mrb[0].mxu0
      %v408 = vadd.f32 0.0, %v407
      %v409 = vpop.f32.mrb[0].mxu0
      %410 = vmatprep.mubr.f32.mxu0 0.0
      %411 = vmatmul.mubr.f32.gmra.mrb[0].mxu0 %v221
      %v412 = vpop.f32.mrb[0].mxu0
      %v413 = vadd.f32 0.0, %v412
      %v414 = vpop.f32.mrb[0].mxu0
      %415 = vmatprep.mubr.f32.mxu0 0.0
      %416 = vmatmul.mubr.f32.gmra.mrb[0].mxu0 %v224
      %v417 = vpop.f32.mrb[0].mxu0
      %v418 = vadd.f32 0.0, %v417
      %v419 = vpop.f32.mrb[0].mxu0
      %420 = vmatprep.mubr.f32.mxu0 0.0
      %421 = vmatmul.mubr.f32.gmra.mrb[0].mxu0 %v227
      %v422 = vpop.f32.mrb[0].mxu0
      %v423 = vadd.f32 0.0, %v422
      %v424 = vpop.f32.mrb[0].mxu0
      %425 = vmatprep.mubr.f32.mxu0 0.0
      %426 = vmatmul.mubr.f32.gmra.mrb[0].mxu0 %v230
      %v427 = vpop.f32.mrb[0].mxu0
      %v428 = vadd.f32 0.0, %v427
      %v429 = vpop.f32.mrb[0].mxu0
      %430 = vmatprep.mubr.f32.mxu0 0.0
      %431 = vmatmul.mubr.f32.gmra.mrb[0].mxu0 %v233
      %v432 = vpop.f32.mrb[0].mxu0
      %v433 = vadd.f32 0.0, %v432
      %v434 = vpop.f32.mrb[0].mxu0
      %435 = vmatprep.mubr.f32.mxu0 0.0
      %436 = vmatmul.mubr.f32.gmra.mrb[0].mxu0 %v236
      %v437 = vpop.f32.mrb[0].mxu0
      %v438 = vadd.f32 0.0, %v437
      %v439 = vpop.f32.mrb[0].mxu0
      %440 = vmatprep.mubr.f32.mxu0 0.0
      %441 = vmatmul.mubr.f32.gmra.mrb[0].mxu0 %v239
      %v442 = vpop.f32.mrb[0].mxu0
      %v443 = vadd.f32 0.0, %v442
      %v444 = vpop.f32.mrb[0].mxu0
      %445 = vmatprep.mubr.f32.mxu0 0.0
      %446 = vmatmul.mubr.f32.gmra.mrb[0].mxu0 %v242
      %v447 = vpop.f32.mrb[0].mxu0
      %v448 = vadd.f32 0.0, %v447
      %v449 = vpop.f32.mrb[0].mxu0
      %450 = vmatprep.mubr.f32.mxu0 0.0
      %451 = vmatmul.mubr.f32.gmra.mrb[0].mxu0 %v245
      %v452 = vpop.f32.mrb[0].mxu0
      %v453 = vadd.f32 0.0, %v452
      %v454 = vpop.f32.mrb[0].mxu0
      %455 = vmatprep.mubr.f32.mxu0 0.0
      %456 = vmatmul.mubr.f32.gmra.mrb[0].mxu0 %v248
      %v457 = vpop.f32.mrb[0].mxu0
      %v458 = vadd.f32 0.0, %v457
      %v459 = vpop.f32.mrb[0].mxu0
      %460 = vmatprep.mubr.f32.mxu0 0.0
      %461 = vmatmul.mubr.f32.gmra.mrb[0].mxu0 %v251
      %v462 = vpop.f32.mrb[0].mxu0
      %v463 = vadd.f32 0.0, %v462
      %v464 = vpop.f32.mrb[0].mxu0
      %465 = vmatprep.mubr.f32.mxu0 0.0
      %466 = vmatmul.mubr.f32.gmra.mrb[0].mxu0 %v254
      %v467 = vpop.f32.mrb[0].mxu0
      %v468 = vadd.f32 0.0, %v467
      %v469 = vpop.f32.mrb[0].mxu0
      %470 = vmatprep.mubr.f32.mxu0 0.0
      %471 = vmatmul.mubr.f32.gmra.mrb[0].mxu0 %v257
      %v472 = vpop.f32.mrb[0].mxu0
      %v473 = vadd.f32 0.0, %v472
      %v474 = vpop.f32.mrb[0].mxu0
      %475 = vmatprep.mubr.f32.mxu0 0.0
      %476 = vmatmul.mubr.f32.gmra.mrb[0].mxu0 %v260
      %v477 = vpop.f32.mrb[0].mxu0
      %v478 = vadd.f32 0.0, %v477
      %v479 = vpop.f32.mrb[0].mxu0
      %480 = vmatprep.mubr.f32.mxu0 0.0
      %481 = vmatmul.mubr.f32.gmra.mrb[0].mxu0 %v263
      %v482 = vpop.f32.mrb[0].mxu0
      %v483 = vadd.f32 0.0, %v482
      %v484 = vpop.f32.mrb[0].mxu0
      %485 = vmatprep.mubr.f32.mxu0 0.0
      %486 = vmatmul.mubr.f32.gmra.mrb[0].mxu0 %v266
      %v487 = vpop.f32.mrb[0].mxu0
      %v488 = vadd.f32 0.0, %v487
      %v489 = vpop.f32.mrb[0].mxu0
      %490 = vmatprep.mubr.f32.mxu0 0.0
      %491 = vmatmul.mubr.f32.gmra.mrb[0].mxu0 %v269
      %v492 = vpop.f32.mrb[0].mxu0
      %v493 = vadd.f32 0.0, %v492
      %v494 = vpop.f32.mrb[0].mxu0
      %495 = vmatprep.mubr.f32.mxu0 0.0
      %496 = vmatmul.mubr.f32.gmra.mrb[0].mxu0 %v272
      %v497 = vpop.f32.mrb[0].mxu0
      %v498 = vadd.f32 0.0, %v497
      %v499 = vpop.f32.mrb[0].mxu0
      %500 = vmatprep.mubr.f32.mxu0 0.0
      %501 = vmatmul.mubr.f32.gmra.mrb[0].mxu0 %v275
      %v502 = vpop.f32.mrb[0].mxu0
      %v503 = vadd.f32 0.0, %v502
      %v504 = vpop.f32.mrb[0].mxu0
      %505 = vdwg.mxu0
      %506 = vst.msk [vmem:[%s145] sm:$0xff] %vm180, %v348
      %507 = vst.msk [vmem:[%s145 + $0x8] sm:$0xff] %vm180, %v353
      %508 = vst.msk [vmem:[%s145 + $0x10] sm:$0xff] %vm180, %v358
      %509 = vst.msk [vmem:[%s145 + $0x18] sm:$0xff] %vm180, %v363
      %510 = vst.msk [vmem:[%s145 + $0x20] sm:$0xff] %vm180, %v368
      %511 = vst.msk [vmem:[%s145 + $0x28] sm:$0xff] %vm180, %v373
      %512 = vst.msk [vmem:[%s145 + $0x30] sm:$0xff] %vm180, %v378
      %513 = vst.msk [vmem:[%s145 + $0x38] sm:$0xff] %vm180, %v383
      %514 = vst.msk [vmem:[%s145 + $0x40] sm:$0xff] %vm180, %v388
      %515 = vst.msk [vmem:[%s145 + $0x48] sm:$0xff] %vm180, %v393
      %516 = vst.msk [vmem:[%s145 + $0x50] sm:$0xff] %vm180, %v398
      %517 = vst.msk [vmem:[%s145 + $0x58] sm:$0xff] %vm180, %v403
      %518 = vst.msk [vmem:[%s145 + $0x60] sm:$0xff] %vm180, %v408
      %519 = vst.msk [vmem:[%s145 + $0x68] sm:$0xff] %vm180, %v413
      %520 = vst.msk [vmem:[%s145 + $0x70] sm:$0xff] %vm180, %v418
      %521 = vst.msk [vmem:[%s145 + $0x78] sm:$0xff] %vm180, %v423
      %522 = vst.msk [vmem:[%s145 + $0x80] sm:$0xff] %vm180, %v428
      %523 = vst.msk [vmem:[%s145 + $0x88] sm:$0xff] %vm180, %v433
      %524 = vst.msk [vmem:[%s145 + $0x90] sm:$0xff] %vm180, %v438
      %525 = vst.msk [vmem:[%s145 + $0x98] sm:$0xff] %vm180, %v443
      %526 = vst.msk [vmem:[%s145 + $0xa0] sm:$0xff] %vm180, %v448
      %527 = vst.msk [vmem:[%s145 + $0xa8] sm:$0xff] %vm180, %v453
      %528 = vst.msk [vmem:[%s145 + $0xb0] sm:$0xff] %vm180, %v458
      %529 = vst.msk [vmem:[%s145 + $0xb8] sm:$0xff] %vm180, %v463
      %530 = vst.msk [vmem:[%s145 + $0xc0] sm:$0xff] %vm180, %v468
      %531 = vst.msk [vmem:[%s145 + $0xc8] sm:$0xff] %vm180, %v473
      %532 = vst.msk [vmem:[%s145 + $0xd0] sm:$0xff] %vm180, %v478
      %533 = vst.msk [vmem:[%s145 + $0xd8] sm:$0xff] %vm180, %v483
      %534 = vst.msk [vmem:[%s145 + $0xe0] sm:$0xff] %vm180, %v488
      %535 = vst.msk [vmem:[%s145 + $0xe8] sm:$0xff] %vm180, %v493
      %536 = vst.msk [vmem:[%s145 + $0xf0] sm:$0xff] %vm180, %v498
      %537 = vst.msk [vmem:[%s145 + $0xf8] sm:$0xff] %vm180, %v503
      %s538 = smul.u32 32, %s13
      %p539 = scmp.lt.s32.totalorder %s538, 63
      %s540 = scalar_select %p539, %s538, 63
      %s541 = smul.addr %s540, 8
      %s542 = scalar_lea.vmem %s2, %s541
      // Predicated region
      $region29: #{tpu_custom_call.1} parent=27 // pred_check
        %p543 = pneg %p78
      $region30: #{tpu_custom_call.1} parent=27 // pred_check_branch
        %545 = sbr.rel (%p543) target = $region32
      $region31: #{tpu_custom_call.1} parent=27 // pred_region
        %s546 = smul.u32 32, %s13
      $region32: #{tpu_custom_call.1} parent=27 // pred_fallthru
        _
    $region28: #{tpu_custom_call.1} parent=5 // pred_fallthru
      _
    %p547 = scmp.le.s32.totalorder 2, %s8
    // Predicated region
    $region33: #{tpu_custom_call.1} parent=5 // pred_check
      %p548 = pneg %p547
    $region34: #{tpu_custom_call.1} parent=5 // pred_check_branch
      %550 = sbr.rel (%p548) target = $region36
    $region35: #{tpu_custom_call.1} parent=5 // pred_region
      %s551 = ssub.s32 %s8, 2
      // Predicated region
      $region37: #{tpu_custom_call.1} parent=35 // pred_check
        %p552 = pneg %p84
      $region38: #{tpu_custom_call.1} parent=35 // pred_check_branch
        %554 = sbr.rel (%p552) target = $region40
      $region39: #{tpu_custom_call.1} parent=35 // pred_region
        %s555 = smul.u32 32, %s14
        %p556 = scmp.lt.s32.totalorder %s555, 63
        %s557 = scalar_select %p556, %s555, 63
        %s558 = smul.addr %s557, 8
        %s559 = scalar_lea.vmem %s2, %s558
      $region40: #{tpu_custom_call.1} parent=35 // pred_fallthru
        _
    $region36: #{tpu_custom_call.1} parent=5 // pred_fallthru
      _
  $region6: #{tpu_custom_call.1} parent=0 // loop_footer
    %s12 = sadd.s32 1, %s8
  $region7: #{tpu_custom_call.1} parent=0 // loop_footer_branch
    %7 = sbr.rel target = $region3
  $region8: #{tpu_custom_call.1} parent=0 // loop_exit
    _

</llo_original>
